<compile_context>
chip_gen: v6e
topology: v6e:2x2x1
jax: 0.10.0
libtpu: 0.0.40
codegen_flags: <defaults>
</compile_context>

<pallas_src>
import dataclasses
import functools

import jax
import jax.numpy as jnp
from jax.experimental import pallas as pl
from jax.experimental.pallas import tpu as pltpu


def _round_up(a: int, b: int) -> int:
    return (a + b - 1) // b * b


def _vmem_budget_bytes() -> int:
    """~75% of this generation's per-core VMEM (leave compiler scratch headroom)."""
    try:
        cap = int(pltpu.get_tpu_info().vmem_capacity_bytes)
    except Exception:
        cap = 64 << 20  # conservative fallback: v7x per-TensorCore VMEM
    return (cap * 3) // 4


def _num_tensorcores() -> int:
    try:
        info = pltpu.get_tpu_info()
        for attr in ("num_tensorcores", "tensorcores_per_chip",
                     "num_cores", "cores_per_chip"):
            v = getattr(info, attr, None)
            if v:
                return int(v)
    except Exception:
        pass
    try:
        return max(1, int(getattr(jax.devices()[0], "num_cores", 1)))
    except Exception:
        return 1


@dataclasses.dataclass(frozen=True)
class GatedTransMeta:
    in_dim: int
    out_dim: int
    k_pad: int
    tc: int
    nj: int
    tk: int
    nk: int
    compute_dtype: object


def prepare_gated_trans_params(wy, by, wg, bg, *,
                               compute_dtype=jnp.bfloat16, col_tile=512):
    """Fuse/pad/cast the two Linear layers ONCE (hoist out of the hot path).

    wy, wg: (in_dim, out_dim); by, bg: (out_dim,).
    Returns (w_fused, b_fused, meta) consumed by gated_trans_fused.
    """
    in_dim, out_dim = wy.shape
    cbytes = jnp.dtype(compute_dtype).itemsize
    budget = _vmem_budget_bytes()

    # Column tile over output features, multiple of 128 lanes.
    col_tile = _round_up(max(col_tile, 128), 128)
    tc = min(col_tile, _round_up(out_dim, 128))
    out_pc = _round_up(out_dim, tc)
    nj = out_pc // tc

    # K (in_dim) tile: full K unless the weight tile alone would blow the budget.
    if in_dim * 2 * tc * cbytes <= budget // 4:
        tk, nk, k_pad = in_dim, 1, in_dim
    else:
        tk = max(128, ((budget // 4) // (2 * tc * cbytes)) // 128 * 128)
        tk = min(tk, 2048)
        k_pad = _round_up(in_dim, tk)
        nk = k_pad // tk

    pad_k, pad_c = k_pad - in_dim, out_pc - out_dim
    wy_p = jnp.pad(wy, ((0, pad_k), (0, pad_c))).astype(compute_dtype)
    wg_p = jnp.pad(wg, ((0, pad_k), (0, pad_c))).astype(compute_dtype)
    # Interleave per column tile: cols [j*2tc, j*2tc+tc) = Wy_j, next tc = Wg_j,
    # so one contiguous 2-D BlockSpec covers both halves of a column tile.
    w = jnp.concatenate(
        [wy_p.reshape(k_pad, nj, tc), wg_p.reshape(k_pad, nj, tc)], axis=2
    ).reshape(k_pad, nj * 2 * tc)
    b = jnp.concatenate(
        [jnp.pad(by, (0, pad_c)).astype(jnp.float32).reshape(nj, tc),
         jnp.pad(bg, (0, pad_c)).astype(jnp.float32).reshape(nj, tc)], axis=1
    ).reshape(1, nj * 2 * tc)

    meta = GatedTransMeta(in_dim=in_dim, out_dim=out_dim, k_pad=k_pad,
                          tc=tc, nj=nj, tk=tk, nk=nk, compute_dtype=compute_dtype)
    return w, b, meta


def _gated_trans_kernel(x_ref, w_ref, b_ref, o_ref, *scratch, tc, nk):
    def finalize(z):
        z = z + b_ref[...].astype(jnp.float32)
        # Gate math in f32 (v5e has no bf16 VPU/EUP path); split is lane-aligned.
        return (jnp.tanh(z[:, :tc]) * jax.nn.sigmoid(z[:, tc:])).astype(o_ref.dtype)

    if nk == 1:
        # Single fused MXU matmul, native (bf16) operands, f32 accumulation.
        z = jnp.dot(x_ref[...], w_ref[...], preferred_element_type=jnp.float32)
        o_ref[...] = finalize(z)
    else:
        acc_ref, = scratch
        k = pl.program_id(2)

        @pl.when(k == 0)
        def _():
            acc_ref[...] = jnp.zeros_like(acc_ref)

        acc_ref[...] += jnp.dot(x_ref[...], w_ref[...],
                                preferred_element_type=jnp.float32)

        @pl.when(k == nk - 1)
        def _():
            o_ref[...] = finalize(acc_ref[...])


def gated_trans_fused(x, w, b, meta, *, tile_n=512):
    """x: (N, in_dim) -> (N, out_dim) using params from prepare_gated_trans_params."""
    N, in_dim = x.shape
    assert in_dim == meta.in_dim, (in_dim, meta.in_dim)
    tc, nj, tk, nk, k_pad = meta.tc, meta.nj, meta.tk, meta.nk, meta.k_pad
    out_dtype = x.dtype
    cbytes = jnp.dtype(meta.compute_dtype).itemsize
    obytes = jnp.dtype(out_dtype).itemsize
    budget = _vmem_budget_bytes()

    # Common MXU compute dtype for both operands (bf16 by default).
    x = x.astype(meta.compute_dtype)
    if k_pad != in_dim:
        # Only when K-tiled (huge in_dim): zero-pad K so partial K blocks can't
        # contaminate the accumulator.
        x = jnp.pad(x, ((0, 0), (0, k_pad - in_dim)))

    # Row tile: sublane multiple matched to the packed dtype; big by default.
    row_mult = max(8, 32 // cbytes)            # f32: 8, bf16: 16, int8/fp8: 32
    tile = min(tile_n, _round_up(N, row_mult))
    tile = max(row_mult, tile // row_mult * row_mult)
    # Give a second TensorCore work only where one exists (v7x); on single-TC
    # chips the forced split just adds grid-step overhead and shrinks DMA tiles.
    if (_num_tensorcores() >= 2 and nj * nk == 1
            and pl.cdiv(N, tile) < 2 and N > row_mult):
        tile = max(row_mult, _round_up(pl.cdiv(N, 2), row_mult))

    def per_step_vmem(t):
        w_bufs = 1 if (nj == 1 and nk == 1) else 2
        return (2 * t * tk * cbytes                 # x tile (double-buffered)
                + w_bufs * tk * 2 * tc * cbytes     # fused weight tile
                + 2 * 2 * tc * 4                    # bias
                + 2 * t * tc * obytes               # output tile (double-buffered)
                + t * 2 * tc * 4)                   # accumulator / pre-activation

    while tile > row_mult and per_step_vmem(tile) > (budget * 7) // 10:
        tile = max(row_mult, (tile // 2) // row_mult * row_mult)

    ni = pl.cdiv(N, tile)                # partial last block handled by Pallas
    resident = (nj == 1 and nk == 1)

    cost = pl.CostEstimate(
        flops=2 * N * meta.in_dim * 2 * meta.out_dim,
        transcendentals=2 * N * meta.out_dim,
        bytes_accessed=(N * k_pad * cbytes + int(w.size) * cbytes
                        + int(b.size) * 4 + N * nj * tc * obytes),
    )

    def build(single_buffer_resident):
        res_kw = ({"pipeline_mode": pl.Buffered(1)}
                  if (resident and single_buffer_resident) else {})
        if nk == 1:
            grid = (nj, ni)              # rows innermost -> weight tile stays put
            in_specs = [
                pl.BlockSpec((tile, tk), lambda j, i: (i, 0)),
                pl.BlockSpec((tk, 2 * tc), lambda j, i: (0, j), **res_kw),
                pl.BlockSpec((1, 2 * tc), lambda j, i: (0, j), **res_kw),
            ]
            out_spec = pl.BlockSpec((tile, tc), lambda j, i: (i, j))
            scratch = []
            sem = ("parallel", "parallel")
        else:
            grid = (nj, ni, nk)
            in_specs = [
                pl.BlockSpec((tile, tk), lambda j, i, k: (i, k)),
                pl.BlockSpec((tk, 2 * tc), lambda j, i, k: (k, j)),
                pl.BlockSpec((1, 2 * tc), lambda j, i, k: (0, j)),
            ]
            out_spec = pl.BlockSpec((tile, tc), lambda j, i, k: (i, j))
            scratch = [pltpu.VMEM((tile, 2 * tc), jnp.float32)]
            sem = ("parallel", "parallel", "arbitrary")

        return pl.pallas_call(
            functools.partial(_gated_trans_kernel, tc=tc, nk=nk),
            out_shape=jax.ShapeDtypeStruct((N, nj * tc), out_dtype),
            grid_spec=pltpu.PrefetchScalarGridSpec(
                num_scalar_prefetch=0,
                grid=grid,
                in_specs=in_specs,
                out_specs=out_spec,
                scratch_shapes=scratch,
            ),
            compiler_params=pltpu.CompilerParams(
                dimension_semantics=sem,
                vmem_limit_bytes=int(budget),
            ),
            cost_estimate=cost,
        )

    try:
        out = build(True)(x, w, b)
    except Exception:
        # Fallback if this JAX build rejects pl.Buffered(1) on resident operands.
        out = build(False)(x, w, b)

    if out.shape[1] != meta.out_dim:
        out = out[:, :meta.out_dim]
    return out


def gated_trans(x, wy, by, wg, bg, *, compute_dtype=jnp.bfloat16, tile_n=512):
    """One-shot convenience wrapper.  For repeated / jitted calls, hoist
    prepare_gated_trans_params out of the hot path and call gated_trans_fused."""
    w, b, meta = prepare_gated_trans_params(wy, by, wg, bg,
                                            compute_dtype=compute_dtype)
    return gated_trans_fused(x, w, b, meta, tile_n=tile_n)


def gated_trans_ref(x, wy, by, wg, bg):
    y = jnp.tanh(x @ wy + by)
    g = jax.nn.sigmoid(x @ wg + bg)
    return y * g


if __name__ == "__main__":
    key = jax.random.PRNGKey(0)
    N, in_dim, out_dim = 16, 32, 64  # small shapes consistent with Linear(in_dim, out_dim)

    kx, kwy, kby, kwg, kbg = jax.random.split(key, 5)
    x = jax.random.normal(kx, (N, in_dim), dtype=jnp.float32)
    bound = 1.0 / (in_dim ** 0.5)
    wy = jax.random.uniform(kwy, (in_dim, out_dim), jnp.float32, -bound, bound)
    by = jax.random.uniform(kby, (out_dim,), jnp.float32, -bound, bound)
    wg = jax.random.uniform(kwg, (in_dim, out_dim), jnp.float32, -bound, bound)
    bg = jax.random.uniform(kbg, (out_dim,), jnp.float32, -bound, bound)

    ref = gated_trans_ref(x, wy, by, wg, bg)

    # 1) f32 compute path: exact check of the kernel math.
    w32, b32, meta32 = prepare_gated_trans_params(wy, by, wg, bg,
                                                  compute_dtype=jnp.float32)
    out32 = jax.block_until_ready(gated_trans_fused(x, w32, b32, meta32))
    assert out32.shape == (N, out_dim)
    assert jnp.allclose(out32, ref, atol=1e-5, rtol=1e-5), "f32 path mismatch vs reference"

    # 2) default bf16 MXU path (perf path): tolerance scaled for bf16 operands.
    wbf, bbf, metabf = prepare_gated_trans_params(wy, by, wg, bg)
    outbf = jax.block_until_ready(gated_trans_fused(x, wbf, bbf, metabf))
    assert outbf.shape == (N, out_dim)
    assert jnp.allclose(outbf, ref, atol=2e-2, rtol=2e-2), "bf16 path mismatch vs reference"

    print("KERNEL_OK")
</pallas_src>

<mosaic_0001>
module attributes {stable_mosaic.version = 11 : i64} {
  func.func @_gated_trans_kernel(%arg0: i32, %arg1: i32, %arg2: memref<16x32xf32, #tpu.memory_space<vmem>>, %arg3: memref<32x256xf32, #tpu.memory_space<vmem>>, %arg4: memref<1x256xf32, #tpu.memory_space<vmem>>, %arg5: memref<16x128xf32, #tpu.memory_space<vmem>>) attributes {dimension_semantics = [#tpu.dimension_semantics<parallel>, #tpu.dimension_semantics<parallel>], iteration_bounds = array<i64: 1, 1>, scalar_prefetch = 0 : i64, scratch_operands = 0 : i64, tpu.core_type = #tpu.core_type<tc>, window_params = [{transform_indices = @transform_0, window_bounds = array<i64: 16, 32>}, {pipeline_mode = #tpu.pipeline_mode<synchronous>, transform_indices = @transform_1, window_bounds = array<i64: 32, 256>}, {pipeline_mode = #tpu.pipeline_mode<synchronous>, transform_indices = @transform_2, window_bounds = array<i64: 1, 256>}, {transform_indices = @transform_3, window_bounds = array<i64: 16, 128>}]} {
    %c0 = arith.constant 0 : index
    %c0_0 = arith.constant 0 : index
    %0 = vector.load %arg2[%c0, %c0_0] : memref<16x32xf32, #tpu.memory_space<vmem>>, vector<16x32xf32>
    %c0_1 = arith.constant 0 : index
    %c0_2 = arith.constant 0 : index
    %1 = vector.load %arg3[%c0_1, %c0_2] : memref<32x256xf32, #tpu.memory_space<vmem>>, vector<32x256xf32>
    %cst = arith.constant dense<0.000000e+00> : vector<16x256xf32>
    %2 = tpu.matmul %0, %1, %cst {dimension_numbers = #tpu.dot_dimension_numbers<[1], [0], [0], [1], [0, 0, 1, 1], [], []>} : vector<16x32xf32>, vector<32x256xf32>, vector<16x256xf32> -> vector<16x256xf32>
    %c0_3 = arith.constant 0 : index
    %c0_4 = arith.constant 0 : index
    %3 = vector.load %arg4[%c0_3, %c0_4] : memref<1x256xf32, #tpu.memory_space<vmem>>, vector<1x256xf32>
    %4 = vector.broadcast %3 : vector<1x256xf32> to vector<16x256xf32>
    %5 = arith.addf %2, %4 : vector<16x256xf32>
    %6 = vector.extract_strided_slice %5 {offsets = [0, 0], sizes = [16, 128], strides = [1, 1]} : vector<16x256xf32> to vector<16x128xf32>
    %7 = math.tanh %6 : vector<16x128xf32>
    %8 = vector.extract_strided_slice %5 {offsets = [0, 128], sizes = [16, 128], strides = [1, 1]} : vector<16x256xf32> to vector<16x128xf32>
    %9 = arith.negf %8 : vector<16x128xf32>
    %10 = math.exp %9 : vector<16x128xf32>
    %cst_5 = arith.constant 1.000000e+00 : f32
    %11 = vector.broadcast %cst_5 : f32 to vector<16x128xf32>
    %12 = arith.addf %11, %10 : vector<16x128xf32>
    %13 = arith.divf %11, %12 : vector<16x128xf32>
    %14 = arith.mulf %7, %13 : vector<16x128xf32>
    %c0_6 = arith.constant 0 : index
    %c0_7 = arith.constant 0 : index
    %15 = vector.load %arg5[%c0_6, %c0_7] : memref<16x128xf32, #tpu.memory_space<vmem>>, vector<16x128xf32>
    tpu.vector_store %arg5[%c0_6, %c0_7], %14 {strides = array<i32>} : memref<16x128xf32, #tpu.memory_space<vmem>>, vector<16x128xf32>,
    return
  }
  func.func @transform_0(%arg0: i32, %arg1: i32) -> (i32, i32) {
    %c0_i32 = arith.constant 0 : i32
    %c0_i32_0 = arith.constant 0 : i32
    return %arg1, %c0_i32 : i32, i32
  }
  func.func @transform_1(%arg0: i32, %arg1: i32) -> (i32, i32) {
    %c0_i32 = arith.constant 0 : i32
    %c0_i32_0 = arith.constant 0 : i32
    return %c0_i32, %arg0 : i32, i32
  }
  func.func @transform_2(%arg0: i32, %arg1: i32) -> (i32, i32) {
    %c0_i32 = arith.constant 0 : i32
    %c0_i32_0 = arith.constant 0 : i32
    return %c0_i32, %arg0 : i32, i32
  }
  func.func @transform_3(%arg0: i32, %arg1: i32) -> (i32, i32) {
    %c0_i32 = arith.constant 0 : i32
    return %arg1, %arg0 : i32, i32
  }
}

module attributes {stable_mosaic.version = 11 : i64} {
  func.func @_gated_trans_kernel(%arg0: i32, %arg1: i32, %arg2: memref<16x32xf32, #tpu.memory_space<vmem>>, %arg3: memref<32x256xf32, #tpu.memory_space<vmem>>, %arg4: memref<1x256xf32, #tpu.memory_space<vmem>>, %arg5: memref<16x128xf32, #tpu.memory_space<vmem>>) attributes {dimension_semantics = [#tpu.dimension_semantics<parallel>, #tpu.dimension_semantics<parallel>], iteration_bounds = array<i64: 1, 1>, scalar_prefetch = 0 : i64, scratch_operands = 0 : i64, tpu.core_type = #tpu.core_type<tc>, window_params = [{transform_indices = @transform_0, window_bounds = array<i64: 16, 32>}, {transform_indices = @transform_1, window_bounds = array<i64: 32, 256>}, {transform_indices = @transform_2, window_bounds = array<i64: 1, 256>}, {transform_indices = @transform_3, window_bounds = array<i64: 16, 128>}]} {
    %c0 = arith.constant 0 : index
    %c0_0 = arith.constant 0 : index
    %0 = vector.load %arg2[%c0, %c0_0] : memref<16x32xf32, #tpu.memory_space<vmem>>, vector<16x32xf32>
    %c0_1 = arith.constant 0 : index
    %c0_2 = arith.constant 0 : index
    %1 = vector.load %arg3[%c0_1, %c0_2] : memref<32x256xf32, #tpu.memory_space<vmem>>, vector<32x256xf32>
    %cst = arith.constant dense<0.000000e+00> : vector<16x256xf32>
    %2 = tpu.matmul %0, %1, %cst {dimension_numbers = #tpu.dot_dimension_numbers<[1], [0], [0], [1], [0, 0, 1, 1], [], []>} : vector<16x32xf32>, vector<32x256xf32>, vector<16x256xf32> -> vector<16x256xf32>
    %c0_3 = arith.constant 0 : index
    %c0_4 = arith.constant 0 : index
    %3 = vector.load %arg4[%c0_3, %c0_4] : memref<1x256xf32, #tpu.memory_space<vmem>>, vector<1x256xf32>
    %4 = vector.broadcast %3 : vector<1x256xf32> to vector<16x256xf32>
    %5 = arith.addf %2, %4 : vector<16x256xf32>
    %6 = vector.extract_strided_slice %5 {offsets = [0, 0], sizes = [16, 128], strides = [1, 1]} : vector<16x256xf32> to vector<16x128xf32>
    %7 = math.tanh %6 : vector<16x128xf32>
    %8 = vector.extract_strided_slice %5 {offsets = [0, 128], sizes = [16, 128], strides = [1, 1]} : vector<16x256xf32> to vector<16x128xf32>
    %9 = arith.negf %8 : vector<16x128xf32>
    %10 = math.exp %9 : vector<16x128xf32>
    %cst_5 = arith.constant 1.000000e+00 : f32
    %11 = vector.broadcast %cst_5 : f32 to vector<16x128xf32>
    %12 = arith.addf %11, %10 : vector<16x128xf32>
    %13 = arith.divf %11, %12 : vector<16x128xf32>
    %14 = arith.mulf %7, %13 : vector<16x128xf32>
    %c0_6 = arith.constant 0 : index
    %c0_7 = arith.constant 0 : index
    %15 = vector.load %arg5[%c0_6, %c0_7] : memref<16x128xf32, #tpu.memory_space<vmem>>, vector<16x128xf32>
    tpu.vector_store %arg5[%c0_6, %c0_7], %14 {strides = array<i32>} : memref<16x128xf32, #tpu.memory_space<vmem>>, vector<16x128xf32>,
    return
  }
  func.func @transform_0(%arg0: i32, %arg1: i32) -> (i32, i32) {
    %c0_i32 = arith.constant 0 : i32
    %c0_i32_0 = arith.constant 0 : i32
    return %arg1, %c0_i32 : i32, i32
  }
  func.func @transform_1(%arg0: i32, %arg1: i32) -> (i32, i32) {
    %c0_i32 = arith.constant 0 : i32
    %c0_i32_0 = arith.constant 0 : i32
    return %c0_i32, %arg0 : i32, i32
  }
  func.func @transform_2(%arg0: i32, %arg1: i32) -> (i32, i32) {
    %c0_i32 = arith.constant 0 : i32
    %c0_i32_0 = arith.constant 0 : i32
    return %c0_i32, %arg0 : i32, i32
  }
  func.func @transform_3(%arg0: i32, %arg1: i32) -> (i32, i32) {
    %c0_i32 = arith.constant 0 : i32
    return %arg1, %arg0 : i32, i32
  }
}

</mosaic_0001>

<llo_original>
// kernel: tpu_custom_call.1
$region0: #{tpu_custom_call.1}
  #allocation0 [shape = 'u32[]', space=smem, size = 0x4, offset = 0x4, fixed_abs, tag = 'smem constant byte address 0x4 - core index']
  #allocation1 [shape = 'u32[144,128]{1,0:T(1,128)}', space=vmem, size = 0x12000, scoped, tag = 'internal scratch']
  %s0 = inlined_call_operand.hbm [shape: f32[16,32], index: 0, kind: input, shape index: {}]
  %s1 = inlined_call_operand.hbm [shape: f32[32,256], index: 1, kind: input, shape index: {}]
  %s2 = inlined_call_operand.vmem [shape: f32[1,256], index: 2, kind: input, shape index: {}]
  %s3 = inlined_call_operand.hbm [shape: f32[16,128], index: 3, kind: output, shape index: {}]
  %s4 = sld [smem:[#allocation0]]
  $region30: #{tpu_custom_call.1} parent=0
    _
  %s6 = ssub.s32 1, %s4
  %s7 = scalar_select 0, %s6, %s4
  $region1: #{tpu_custom_call.1} parent=0
    #allocation2 [shape = 'u8[8192]{0}', space=vmem, size = 0x2000, scoped, tag = 'input window, operand 0, single buffered']
    #allocation3 [shape = 's32[1]{0}', space=sflag, size = 0x4, scoped, tag = 'scoped memory for tpu_custom_call.1']
    #allocation4 [shape = 's32[1]{0}', space=sflag, size = 0x4, scoped, tag = 'scoped memory for tpu_custom_call.1']
    #allocation5 [shape = 'u8[32768]{0}', space=vmem, size = 0x8000, scoped, tag = 'input window, operand 1, single buffered']
    #allocation6 [shape = 's32[1]{0}', space=sflag, size = 0x4, scoped, tag = 'scoped memory for tpu_custom_call.1']
    #allocation7 [shape = 'u8[8192]{0}', space=vmem, size = 0x2000, scoped, tag = 'output window, operand 0, single buffered']
    %8 = vsyncpa [#allocation3], 0
    %9 = vsyncpa [#allocation6], 0
    %10 = vsyncpa [#allocation4], 0
    // Predicated region
    $region2: #{tpu_custom_call.1} parent=1 // pred_check
      _
    $region3: #{tpu_custom_call.1} parent=1 // pred_check_branch
      %12 = sbr.rel (0) target = $region5
    $region4: #{tpu_custom_call.1} parent=1 // pred_region
      %s14 = ssub.s32 256, 256
      %15 = vsyncadd [#allocation3], %s14
      %s16 = sshll.u32 [#allocation2], 4
      %s17 = int_to_ptr.vmem [resolvable:$true] %s16
      %22 = dma.hbm_to_vmem [thread:$0]  %s0, 256, %s17, [#allocation3], 128, 128, 8
    $region5: #{tpu_custom_call.1} parent=1 // pred_fallthru
      _
    // Predicated region
    $region6: #{tpu_custom_call.1} parent=1 // pred_check
      _
    $region7: #{tpu_custom_call.1} parent=1 // pred_check_branch
      %24 = sbr.rel (0) target = $region9
    $region8: #{tpu_custom_call.1} parent=1 // pred_region
      %s26 = ssub.s32 1024, 1024
      %27 = vsyncadd [#allocation6], %s26
      %s28 = sshll.u32 [#allocation5], 4
      %s29 = int_to_ptr.vmem [resolvable:$true] %s28
      %34 = dma.hbm_to_vmem [thread:$0]  %s1, 1024, %s29, [#allocation6], 256, 256, 16
    $region9: #{tpu_custom_call.1} parent=1 // pred_fallthru
      _
    // Predicated region
    $region10: #{tpu_custom_call.1} parent=1 // pred_check
      _
    $region11: #{tpu_custom_call.1} parent=1 // pred_check_branch
      %36 = sbr.rel (0) target = $region13
    $region12: #{tpu_custom_call.1} parent=1 // pred_region
      _
    $region13: #{tpu_custom_call.1} parent=1 // pred_fallthru
      _
    // Predicated region
    $region14: #{tpu_custom_call.1} parent=1 // pred_check
      _
    $region15: #{tpu_custom_call.1} parent=1 // pred_check_branch
      %38 = sbr.rel (0) target = $region17
    $region16: #{tpu_custom_call.1} parent=1 // pred_region
      %39 = dma.done [#allocation3], 256
    $region17: #{tpu_custom_call.1} parent=1 // pred_fallthru
      _
    // Predicated region
    $region18: #{tpu_custom_call.1} parent=1 // pred_check
      _
    $region19: #{tpu_custom_call.1} parent=1 // pred_check_branch
      %41 = sbr.rel (0) target = $region21
    $region20: #{tpu_custom_call.1} parent=1 // pred_region
      %42 = dma.done [#allocation6], 1024
    $region21: #{tpu_custom_call.1} parent=1 // pred_fallthru
      _
    %v43 = vld [vmem:[#allocation2] sm:$0xff]
    %v44 = vld [vmem:[#allocation2 + $0x8] sm:$0xff]
    %v45 = vld [vmem:[#allocation5] sm:$0xff]
    %v46 = vld [vmem:[#allocation5 + $0x8] sm:$0xff]
    %v47 = vld [vmem:[#allocation5 + $0x10] sm:$0xff]
    %v48 = vld [vmem:[#allocation5 + $0x18] sm:$0xff]
    %v49 = vld [vmem:[#allocation5 + $0x20] sm:$0xff]
    %v50 = vld [vmem:[#allocation5 + $0x28] sm:$0xff]
    %v51 = vld [vmem:[#allocation5 + $0x30] sm:$0xff]
    %v52 = vld [vmem:[#allocation5 + $0x38] sm:$0xff]
    %v53 = vld [vmem:[%s2] sm:$0x3]
    %v55 = vlaneseq
    %v56 = vshrl.u32 %v55, 7
    %v57 = vsub.s32 0, %v56
    %v58 = vrot.slane %v53, %v57
    %v59 = vlaneseq
    %v60 = vshrl.u32 %v59, 7
    %v61 = vsub.s32 1, %v60
    %v62 = vrot.slane %v53, %v61
    %vm65 = vcmask 261120
    %v67 = vsel %vm65, %v43, 0
    %v70 = vsel %vm65, %v44, 0
    %72 = vmatprep.subr.mxu0 0.0
    %73 = vmatpush1.msra.mxu0 0.0
    %74 = vmatprep.subr.mxu0 0.0
    %75 = vmatpush1.msra.mxu0 0.0
    %76 = vmatprep.subr.mxu0 0.0
    %77 = vmatpush1.msra.mxu0 0.0
    %78 = vmatprep.subr.mxu0 0.0
    %79 = vmatpush1.msra.mxu0 0.0
    %80 = vmatprep.subr.mxu0 0.0
    %81 = vmatpush1.msra.mxu0 0.0
    %82 = vmatprep.subr.mxu0 0.0
    %83 = vmatpush1.msra.mxu0 0.0
    %84 = vmatprep.subr.mxu0 0.0
    %85 = vmatpush1.msra.mxu0 0.0
    %86 = vmatprep.subr.mxu0 0.0
    %87 = vmatpush1.msra.mxu0 0.0
    %88 = vmatprep.subr.mxu0 0.0
    %89 = vmatpush1.msra.mxu0 0.0
    %90 = vmatprep.subr.mxu0 0.0
    %91 = vmatpush1.msra.mxu0 0.0
    %92 = vmatprep.subr.mxu0 0.0
    %93 = vmatpush1.msra.mxu0 0.0
    %94 = vmatprep.subr.mxu0 0.0
    %95 = vmatpush1.msra.mxu0 0.0
    %96 = vmatprep.subr.mxu0 %v52
    %97 = vmatpush1.msra.mxu0 %v51
    %98 = vmatprep.subr.mxu0 %v50
    %99 = vmatpush1.msra.mxu0 %v49
    %100 = vmatprep.subr.mxu0 %v48
    %101 = vmatpush1.msra.mxu0 %v47
    %102 = vmatprep.subr.mxu0 %v46
    %103 = vmatpush1.msra.mxu0 %v45
    %104 = vmatprep.subr.mxu0 0.0
    %105 = vmatpush2.msra.mxu0 0.0
    %106 = vmatprep.subr.mxu0 0.0
    %107 = vmatpush2.msra.mxu0 0.0
    %108 = vmatprep.subr.mxu0 0.0
    %109 = vmatpush2.msra.mxu0 0.0
    %110 = vmatprep.subr.mxu0 0.0
    %111 = vmatpush2.msra.mxu0 0.0
    %112 = vmatprep.subr.mxu0 0.0
    %113 = vmatpush2.msra.mxu0 0.0
    %114 = vmatprep.subr.mxu0 0.0
    %115 = vmatpush2.msra.mxu0 0.0
    %116 = vmatprep.subr.mxu0 0.0
    %117 = vmatpush2.msra.mxu0 0.0
    %118 = vmatprep.subr.mxu0 0.0
    %119 = vmatpush2.msra.mxu0 0.0
    %120 = vmatprep.subr.mxu0 0.0
    %121 = vmatpush2.msra.mxu0 0.0
    %122 = vmatprep.subr.mxu0 0.0
    %123 = vmatpush2.msra.mxu0 0.0
    %124 = vmatprep.subr.mxu0 0.0
    %125 = vmatpush2.msra.mxu0 0.0
    %126 = vmatprep.subr.mxu0 0.0
    %127 = vmatpush2.msra.mxu0 0.0
    %128 = vmatprep.subr.mxu0 0.0
    %129 = vmatpush2.msra.mxu0 0.0
    %130 = vmatprep.subr.mxu0 0.0
    %131 = vmatpush2.msra.mxu0 0.0
    %132 = vmatprep.subr.mxu0 0.0
    %133 = vmatpush2.msra.mxu0 0.0
    %134 = vmatprep.subr.mxu0 0.0
    %135 = vmatpush2.msra.mxu0 0.0
    %136 = vmatprep.mubr.f32.mxu0 0.0
    %137 = vmatmul.mubr.f32.gmra.mxu0 %v67
    %v138 = vpop.f32.mrf.mxu0
    %v139 = vadd.f32 %v58, %v138
    %v140 = vpop.f32.mrf.mxu0
    %v141 = vadd.f32 %v62, %v140
    %142 = vmatprep.mubr.f32.mxu0 0.0
    %143 = vmatmul.mubr.f32.gmra.mxu0 %v70
    %v144 = vpop.f32.mrf.mxu0
    %v145 = vadd.f32 %v58, %v144
    %v146 = vpop.f32.mrf.mxu0
    %v147 = vadd.f32 %v62, %v146
    %148 = vdwg.mxu0
    %v149 = vtanh.pop %v139
    %v150 = vtanh.pop %v145
    %v151 = vxor.u32 %v141, 2147483648
    %v152 = vxor.u32 %v147, 2147483648
    %v153 = vmul.f32 %v151, 1.442695
    %v154 = vpow.pop %v153
    %v155 = vmul.f32 %v152, 1.442695
    %v156 = vpow.pop %v155
    %v157 = vadd.f32 %v154, 1.0
    %v158 = vadd.f32 %v156, 1.0
    %v159 = vrcp.pop %v157
    %v160 = vmul.f32 1.0, %v159
    %v161 = vrcp.pop %v158
    %v162 = vmul.f32 1.0, %v161
    %v163 = vmul.f32 %v149, %v160
    %v164 = vmul.f32 %v150, %v162
    %165 = vst [vmem:[#allocation7] sm:$0xff] %v163
    %166 = vst [vmem:[#allocation7 + $0x8] sm:$0xff] %v164
    // Predicated region
    $region22: #{tpu_custom_call.1} parent=1 // pred_check
      _
    $region23: #{tpu_custom_call.1} parent=1 // pred_check_branch
      %168 = sbr.rel (0) target = $region25
    $region24: #{tpu_custom_call.1} parent=1 // pred_region
      %s170 = ssub.s32 256, 256
      %171 = vsyncadd [#allocation4], %s170
      %s172 = sshll.u32 [#allocation7], 4
      %s173 = int_to_ptr.vmem [resolvable:$true] %s172
      %178 = dma.vmem_to_hbm [thread:$0]  %s173, 256, %s3, [#allocation4], 128, 128, 8
    $region25: #{tpu_custom_call.1} parent=1 // pred_fallthru
      _
    // Predicated region
    $region26: #{tpu_custom_call.1} parent=1 // pred_check
      _
    $region27: #{tpu_custom_call.1} parent=1 // pred_check_branch
      %180 = sbr.rel (0) target = $region29
    $region28: #{tpu_custom_call.1} parent=1 // pred_region
      %181 = dma.done [#allocation4], 256
    $region29: #{tpu_custom_call.1} parent=1 // pred_fallthru
      _
    %182 = vsyncpa [#allocation3], 1
    %183 = vsyncpa [#allocation6], 1
    %184 = vsyncpa [#allocation4], 1

// kernel: tpu_custom_call.1
$region0: #{tpu_custom_call.1}
  #allocation0 [shape = 'u32[]', space=smem, size = 0x4, offset = 0x4, fixed_abs, tag = 'smem constant byte address 0x4 - core index']
  #allocation1 [shape = 'u32[144,128]{1,0:T(1,128)}', space=vmem, size = 0x12000, scoped, tag = 'internal scratch']
  %s0 = inlined_call_operand.hbm [shape: f32[16,32], index: 0, kind: input, shape index: {}]
  %s1 = inlined_call_operand.hbm [shape: f32[32,256], index: 1, kind: input, shape index: {}]
  %s2 = inlined_call_operand.vmem [shape: f32[1,256], index: 2, kind: input, shape index: {}]
  %s3 = inlined_call_operand.hbm [shape: f32[16,128], index: 3, kind: output, shape index: {}]
  %s4 = sld [smem:[#allocation0]]
  $region30: #{tpu_custom_call.1} parent=0
    _
  %s6 = ssub.s32 1, %s4
  %s7 = scalar_select 0, %s6, %s4
  $region1: #{tpu_custom_call.1} parent=0
    #allocation2 [shape = 'u8[8192]{0}', space=vmem, size = 0x2000, scoped, tag = 'input window, operand 0, single buffered']
    #allocation3 [shape = 's32[1]{0}', space=sflag, size = 0x4, scoped, tag = 'scoped memory for tpu_custom_call.1']
    #allocation4 [shape = 's32[1]{0}', space=sflag, size = 0x4, scoped, tag = 'scoped memory for tpu_custom_call.1']
    #allocation5 [shape = 'u8[32768]{0}', space=vmem, size = 0x8000, scoped, tag = 'input window, operand 1, single buffered']
    #allocation6 [shape = 's32[1]{0}', space=sflag, size = 0x4, scoped, tag = 'scoped memory for tpu_custom_call.1']
    #allocation7 [shape = 'u8[8192]{0}', space=vmem, size = 0x2000, scoped, tag = 'output window, operand 0, single buffered']
    %8 = vsyncpa [#allocation3], 0
    %9 = vsyncpa [#allocation6], 0
    %10 = vsyncpa [#allocation4], 0
    // Predicated region
    $region2: #{tpu_custom_call.1} parent=1 // pred_check
      _
    $region3: #{tpu_custom_call.1} parent=1 // pred_check_branch
      %12 = sbr.rel (0) target = $region5
    $region4: #{tpu_custom_call.1} parent=1 // pred_region
      %s14 = ssub.s32 256, 256
      %15 = vsyncadd [#allocation3], %s14
      %s16 = sshll.u32 [#allocation2], 4
      %s17 = int_to_ptr.vmem [resolvable:$true] %s16
      %22 = dma.hbm_to_vmem [thread:$0]  %s0, 256, %s17, [#allocation3], 128, 128, 8
    $region5: #{tpu_custom_call.1} parent=1 // pred_fallthru
      _
    // Predicated region
    $region6: #{tpu_custom_call.1} parent=1 // pred_check
      _
    $region7: #{tpu_custom_call.1} parent=1 // pred_check_branch
      %24 = sbr.rel (0) target = $region9
    $region8: #{tpu_custom_call.1} parent=1 // pred_region
      %s26 = ssub.s32 1024, 1024
      %27 = vsyncadd [#allocation6], %s26
      %s28 = sshll.u32 [#allocation5], 4
      %s29 = int_to_ptr.vmem [resolvable:$true] %s28
      %34 = dma.hbm_to_vmem [thread:$0]  %s1, 1024, %s29, [#allocation6], 256, 256, 16
    $region9: #{tpu_custom_call.1} parent=1 // pred_fallthru
      _
    // Predicated region
    $region10: #{tpu_custom_call.1} parent=1 // pred_check
      _
    $region11: #{tpu_custom_call.1} parent=1 // pred_check_branch
      %36 = sbr.rel (0) target = $region13
    $region12: #{tpu_custom_call.1} parent=1 // pred_region
      _
    $region13: #{tpu_custom_call.1} parent=1 // pred_fallthru
      _
    // Predicated region
    $region14: #{tpu_custom_call.1} parent=1 // pred_check
      _
    $region15: #{tpu_custom_call.1} parent=1 // pred_check_branch
      %38 = sbr.rel (0) target = $region17
    $region16: #{tpu_custom_call.1} parent=1 // pred_region
      %39 = dma.done [#allocation3], 256
    $region17: #{tpu_custom_call.1} parent=1 // pred_fallthru
      _
    // Predicated region
    $region18: #{tpu_custom_call.1} parent=1 // pred_check
      _
    $region19: #{tpu_custom_call.1} parent=1 // pred_check_branch
      %41 = sbr.rel (0) target = $region21
    $region20: #{tpu_custom_call.1} parent=1 // pred_region
      %42 = dma.done [#allocation6], 1024
    $region21: #{tpu_custom_call.1} parent=1 // pred_fallthru
      _
    %v43 = vld [vmem:[#allocation2] sm:$0xff]
    %v44 = vld [vmem:[#allocation2 + $0x8] sm:$0xff]
    %v45 = vld [vmem:[#allocation5] sm:$0xff]
    %v46 = vld [vmem:[#allocation5 + $0x8] sm:$0xff]
    %v47 = vld [vmem:[#allocation5 + $0x10] sm:$0xff]
    %v48 = vld [vmem:[#allocation5 + $0x18] sm:$0xff]
    %v49 = vld [vmem:[#allocation5 + $0x20] sm:$0xff]
    %v50 = vld [vmem:[#allocation5 + $0x28] sm:$0xff]
    %v51 = vld [vmem:[#allocation5 + $0x30] sm:$0xff]
    %v52 = vld [vmem:[#allocation5 + $0x38] sm:$0xff]
    %v53 = vld [vmem:[%s2] sm:$0x3]
    %v55 = vlaneseq
    %v56 = vshrl.u32 %v55, 7
    %v57 = vsub.s32 0, %v56
    %v58 = vrot.slane %v53, %v57
    %v59 = vlaneseq
    %v60 = vshrl.u32 %v59, 7
    %v61 = vsub.s32 1, %v60
    %v62 = vrot.slane %v53, %v61
    %vm65 = vcmask 261120
    %v67 = vsel %vm65, %v43, 0
    %v70 = vsel %vm65, %v44, 0
    %72 = vmatprep.subr.mxu0 0.0
    %73 = vmatpush1.msra.mxu0 0.0
    %74 = vmatprep.subr.mxu0 0.0
    %75 = vmatpush1.msra.mxu0 0.0
    %76 = vmatprep.subr.mxu0 0.0
    %77 = vmatpush1.msra.mxu0 0.0
    %78 = vmatprep.subr.mxu0 0.0
    %79 = vmatpush1.msra.mxu0 0.0
    %80 = vmatprep.subr.mxu0 0.0
    %81 = vmatpush1.msra.mxu0 0.0
    %82 = vmatprep.subr.mxu0 0.0
    %83 = vmatpush1.msra.mxu0 0.0
    %84 = vmatprep.subr.mxu0 0.0
    %85 = vmatpush1.msra.mxu0 0.0
    %86 = vmatprep.subr.mxu0 0.0
    %87 = vmatpush1.msra.mxu0 0.0
    %88 = vmatprep.subr.mxu0 0.0
    %89 = vmatpush1.msra.mxu0 0.0
    %90 = vmatprep.subr.mxu0 0.0
    %91 = vmatpush1.msra.mxu0 0.0
    %92 = vmatprep.subr.mxu0 0.0
    %93 = vmatpush1.msra.mxu0 0.0
    %94 = vmatprep.subr.mxu0 0.0
    %95 = vmatpush1.msra.mxu0 0.0
    %96 = vmatprep.subr.mxu0 %v52
    %97 = vmatpush1.msra.mxu0 %v51
    %98 = vmatprep.subr.mxu0 %v50
    %99 = vmatpush1.msra.mxu0 %v49
    %100 = vmatprep.subr.mxu0 %v48
    %101 = vmatpush1.msra.mxu0 %v47
    %102 = vmatprep.subr.mxu0 %v46
    %103 = vmatpush1.msra.mxu0 %v45
    %104 = vmatprep.subr.mxu0 0.0
    %105 = vmatpush2.msra.mxu0 0.0
    %106 = vmatprep.subr.mxu0 0.0
    %107 = vmatpush2.msra.mxu0 0.0
    %108 = vmatprep.subr.mxu0 0.0
    %109 = vmatpush2.msra.mxu0 0.0
    %110 = vmatprep.subr.mxu0 0.0
    %111 = vmatpush2.msra.mxu0 0.0
    %112 = vmatprep.subr.mxu0 0.0
    %113 = vmatpush2.msra.mxu0 0.0
    %114 = vmatprep.subr.mxu0 0.0
    %115 = vmatpush2.msra.mxu0 0.0
    %116 = vmatprep.subr.mxu0 0.0
    %117 = vmatpush2.msra.mxu0 0.0
    %118 = vmatprep.subr.mxu0 0.0
    %119 = vmatpush2.msra.mxu0 0.0
    %120 = vmatprep.subr.mxu0 0.0
    %121 = vmatpush2.msra.mxu0 0.0
    %122 = vmatprep.subr.mxu0 0.0
    %123 = vmatpush2.msra.mxu0 0.0
    %124 = vmatprep.subr.mxu0 0.0
    %125 = vmatpush2.msra.mxu0 0.0
    %126 = vmatprep.subr.mxu0 0.0
    %127 = vmatpush2.msra.mxu0 0.0
    %128 = vmatprep.subr.mxu0 0.0
    %129 = vmatpush2.msra.mxu0 0.0
    %130 = vmatprep.subr.mxu0 0.0
    %131 = vmatpush2.msra.mxu0 0.0
    %132 = vmatprep.subr.mxu0 0.0
    %133 = vmatpush2.msra.mxu0 0.0
    %134 = vmatprep.subr.mxu0 0.0
    %135 = vmatpush2.msra.mxu0 0.0
    %136 = vmatprep.mubr.f32.mxu0 0.0
    %137 = vmatmul.mubr.f32.gmra.mxu0 %v67
    %v138 = vpop.f32.mrf.mxu0
    %v139 = vadd.f32 %v58, %v138
    %v140 = vpop.f32.mrf.mxu0
    %v141 = vadd.f32 %v62, %v140
    %142 = vmatprep.mubr.f32.mxu0 0.0
    %143 = vmatmul.mubr.f32.gmra.mxu0 %v70
    %v144 = vpop.f32.mrf.mxu0
    %v145 = vadd.f32 %v58, %v144
    %v146 = vpop.f32.mrf.mxu0
    %v147 = vadd.f32 %v62, %v146
    %148 = vdwg.mxu0
    %v149 = vtanh.pop %v139
    %v150 = vtanh.pop %v145
    %v151 = vxor.u32 %v141, 2147483648
    %v152 = vxor.u32 %v147, 2147483648
    %v153 = vmul.f32 %v151, 1.442695
    %v154 = vpow.pop %v153
    %v155 = vmul.f32 %v152, 1.442695
    %v156 = vpow.pop %v155
    %v157 = vadd.f32 %v154, 1.0
    %v158 = vadd.f32 %v156, 1.0
    %v159 = vrcp.pop %v157
    %v160 = vmul.f32 1.0, %v159
    %v161 = vrcp.pop %v158
    %v162 = vmul.f32 1.0, %v161
    %v163 = vmul.f32 %v149, %v160
    %v164 = vmul.f32 %v150, %v162
    %165 = vst [vmem:[#allocation7] sm:$0xff] %v163
    %166 = vst [vmem:[#allocation7 + $0x8] sm:$0xff] %v164
    // Predicated region
    $region22: #{tpu_custom_call.1} parent=1 // pred_check
      _
    $region23: #{tpu_custom_call.1} parent=1 // pred_check_branch
      %168 = sbr.rel (0) target = $region25
    $region24: #{tpu_custom_call.1} parent=1 // pred_region
      %s170 = ssub.s32 256, 256
      %171 = vsyncadd [#allocation4], %s170
      %s172 = sshll.u32 [#allocation7], 4
      %s173 = int_to_ptr.vmem [resolvable:$true] %s172
      %178 = dma.vmem_to_hbm [thread:$0]  %s173, 256, %s3, [#allocation4], 128, 128, 8
    $region25: #{tpu_custom_call.1} parent=1 // pred_fallthru
      _
    // Predicated region
    $region26: #{tpu_custom_call.1} parent=1 // pred_check
      _
    $region27: #{tpu_custom_call.1} parent=1 // pred_check_branch
      %180 = sbr.rel (0) target = $region29
    $region28: #{tpu_custom_call.1} parent=1 // pred_region
      %181 = dma.done [#allocation4], 256
    $region29: #{tpu_custom_call.1} parent=1 // pred_fallthru
      _
    %182 = vsyncpa [#allocation3], 1
    %183 = vsyncpa [#allocation6], 1
    %184 = vsyncpa [#allocation4], 1

</llo_original>
